<compile_context>
chip_gen: v5e
topology: v5e:2x2
jax: 0.10.0
libtpu: 0.0.40
codegen_flags: <defaults>
</compile_context>

<pallas_src>
import jax
import jax.numpy as jnp
from jax.experimental import pallas as pl
from jax.experimental.pallas import tpu as pltpu


def _graph_unpool_kernel(w_ref, x_ref, b_ref, o_ref):
    # w_ref : (tm, N_in)   unpool weight tile (nn.Linear weight layout)
    # x_ref : (N_in, tn)   node features (lane dim = F tile or fused B*F tile)
    # b_ref : (tm, 1)      bias tile
    # o_ref : (tm, tn)
    y = jnp.dot(w_ref[...], x_ref[...], preferred_element_type=jnp.float32)
    y = y + b_ref[...].astype(jnp.float32)          # broadcast over lanes
    o_ref[...] = y.astype(o_ref.dtype)


def _unpool_direct(X, W, b2, *, block_m, block_f):
    """F is a multiple of 128: read/write X and Y in their native layouts
    (no HBM transposes).  Grid = (N_out tiles, B, F tiles)."""
    B, N_in, F = X.shape
    N_out = W.shape[0]

    tm = N_out if N_out <= block_m else block_m
    tf = F if F <= block_f else block_f
    grid = (pl.cdiv(N_out, tm), B, pl.cdiv(F, tf))

    return pl.pallas_call(
        _graph_unpool_kernel,
        out_shape=jax.ShapeDtypeStruct((B, N_out, F), X.dtype),
        grid_spec=pltpu.PrefetchScalarGridSpec(
            num_scalar_prefetch=0,
            grid=grid,
            in_specs=[
                # W/bias depend only on the OUTERMOST axis -> stay VMEM-resident
                pl.BlockSpec((tm, N_in), lambda i, j, k: (i, 0)),          # W rows
                pl.BlockSpec((None, N_in, tf), lambda i, j, k: (j, 0, k)),  # X (batch squeezed)
                pl.BlockSpec((tm, 1), lambda i, j, k: (i, 0)),              # bias
            ],
            out_specs=pl.BlockSpec((None, tm, tf), lambda i, j, k: (j, i, k)),
        ),
        compiler_params=pltpu.CompilerParams(
            dimension_semantics=("parallel", "parallel", "parallel")),
    )(W, X, b2)


def _unpool_fused(X, W, b2, *, block_m, block_n):
    """F not a multiple of 128: fuse batch into the lane dim so output stores
    stay lane-dense.  Wrapper-side layout plumbing (transpose) is the price."""
    B, N_in, F = X.shape
    N_out = W.shape[0]
    L = B * F

    # (B, N_in, F) -> (N_in, B*F)
    X2 = jnp.transpose(X, (1, 0, 2)).reshape(N_in, L)

    tm = N_out if N_out <= block_m else block_m
    tn = L if L <= block_n else block_n
    if L >= 256 and tn == L:
        # >=2 lane tiles: lets v7x's 2 TensorCores split the mem-bound work;
        # on v5e/v6e the extra step costs ~0.35 us (negligible).
        tn = max(128, ((L // 2 + 127) // 128) * 128)
    grid = (pl.cdiv(N_out, tm), pl.cdiv(L, tn))

    out2 = pl.pallas_call(
        _graph_unpool_kernel,
        out_shape=jax.ShapeDtypeStruct((N_out, L), X.dtype),
        grid_spec=pltpu.PrefetchScalarGridSpec(
            num_scalar_prefetch=0,
            grid=grid,
            in_specs=[
                pl.BlockSpec((tm, N_in), lambda i, j: (i, 0)),   # W rows (resident across j)
                pl.BlockSpec((N_in, tn), lambda i, j: (0, j)),   # X lanes
                pl.BlockSpec((tm, 1), lambda i, j: (i, 0)),      # bias
            ],
            out_specs=pl.BlockSpec((tm, tn), lambda i, j: (i, j)),
        ),
        compiler_params=pltpu.CompilerParams(
            dimension_semantics=("parallel", "parallel")),
    )(W, X2, b2)

    # (N_out, B*F) -> (B, N_out, F)
    return out2.reshape(N_out, B, F).transpose(1, 0, 2)


def graph_unpool(X, W, b, *, block_m=256, block_n=2048):
    """X: (B, N_in, F), W: (N_out, N_in) [nn.Linear layout], b: (N_out,)
    Returns (B, N_out, F)."""
    B, N_in, F = X.shape
    N_out = W.shape[0]
    b2 = b.reshape(N_out, 1)

    if F % 128 == 0:
        # Native-layout path: no HBM transposes (biggest bandwidth win).
        return _unpool_direct(X, W, b2, block_m=block_m, block_f=block_n)
    # Lane-dense fallback for narrow F.
    return _unpool_fused(X, W, b2, block_m=block_m, block_n=block_n)


def _reference(X, W, b):
    # Mirrors the PyTorch forward exactly:
    #   X.transpose(1,2) @ W.T + b, then transpose back.
    Xt = jnp.swapaxes(X, 1, 2)            # (B, F, N_in)
    Yt = Xt @ W.T + b                     # (B, F, N_out)
    return jnp.swapaxes(Yt, 1, 2)         # (B, N_out, F)


if __name__ == "__main__":
    key = jax.random.PRNGKey(0)
    k1, k2, k3, k4 = jax.random.split(key, 4)

    B, N_in, N_out = 2, 16, 32
    # nn.Linear(in_nodes, out_nodes): weight (N_out, N_in), bias (N_out,)
    W = jax.random.normal(k2, (N_out, N_in), dtype=jnp.float32) * (1.0 / jnp.sqrt(N_in))
    bvec = jax.random.normal(k3, (N_out,), dtype=jnp.float32) * 0.01

    # Path 1: direct native-layout path (F multiple of 128, no HBM transposes)
    F1 = 128
    X1 = jax.random.normal(k1, (B, N_in, F1), dtype=jnp.float32)
    out1 = jax.block_until_ready(graph_unpool(X1, W, bvec))
    ref1 = _reference(X1, W, bvec)
    assert out1.shape == (B, N_out, F1)
    assert jnp.allclose(out1, ref1, atol=1e-4, rtol=1e-4), "direct-path mismatch"

    # Path 2: fused-lane fallback (F=64, lane dim = B*F = 128)
    F2 = 64
    X2 = jax.random.normal(k4, (B, N_in, F2), dtype=jnp.float32)
    out2 = jax.block_until_ready(graph_unpool(X2, W, bvec))
    ref2 = _reference(X2, W, bvec)
    assert out2.shape == (B, N_out, F2)
    assert jnp.allclose(out2, ref2, atol=1e-4, rtol=1e-4), "fused-path mismatch"

    print("KERNEL_OK")
</pallas_src>

<mosaic_0001>
module attributes {stable_mosaic.version = 11 : i64} {
  func.func @_graph_unpool_kernel(%arg0: i32, %arg1: i32, %arg2: i32, %arg3: memref<32x16xf32, #tpu.memory_space<vmem>>, %arg4: memref<1x16x128xf32, #tpu.memory_space<vmem>>, %arg5: memref<32x1xf32, #tpu.memory_space<vmem>>, %arg6: memref<1x32x128xf32, #tpu.memory_space<vmem>>) attributes {dimension_semantics = [#tpu.dimension_semantics<parallel>, #tpu.dimension_semantics<parallel>, #tpu.dimension_semantics<parallel>], iteration_bounds = array<i64: 1, 2, 1>, scalar_prefetch = 0 : i64, scratch_operands = 0 : i64, tpu.core_type = #tpu.core_type<tc>, window_params = [{transform_indices = @transform_0, window_bounds = array<i64: 32, 16>}, {transform_indices = @transform_1, window_bounds = array<i64: 1, 16, 128>}, {transform_indices = @transform_2, window_bounds = array<i64: 32, 1>}, {transform_indices = @transform_3, window_bounds = array<i64: 1, 32, 128>}]} {
    %c0 = arith.constant 0 : index
    %c0_0 = arith.constant 0 : index
    %0 = vector.load %arg3[%c0, %c0_0] : memref<32x16xf32, #tpu.memory_space<vmem>>, vector<32x16xf32>
    %c0_1 = arith.constant 0 : index
    %c0_2 = arith.constant 0 : index
    %c0_3 = arith.constant 0 : index
    %1 = vector.load %arg4[%c0_1, %c0_2, %c0_3] : memref<1x16x128xf32, #tpu.memory_space<vmem>>, vector<1x16x128xf32>
    %2 = vector.shape_cast %1 : vector<1x16x128xf32> to vector<16x128xf32>
    %cst = arith.constant dense<0.000000e+00> : vector<32x128xf32>
    %3 = tpu.matmul %0, %2, %cst {dimension_numbers = #tpu.dot_dimension_numbers<[1], [0], [0], [1], [0, 0, 1, 1], [], []>} : vector<32x16xf32>, vector<16x128xf32>, vector<32x128xf32> -> vector<32x128xf32>
    %c0_4 = arith.constant 0 : index
    %c0_5 = arith.constant 0 : index
    %4 = vector.load %arg5[%c0_4, %c0_5] : memref<32x1xf32, #tpu.memory_space<vmem>>, vector<32x1xf32>
    %5 = vector.broadcast %4 : vector<32x1xf32> to vector<32x128xf32>
    %6 = arith.addf %3, %5 : vector<32x128xf32>
    %c0_6 = arith.constant 0 : index
    %c0_7 = arith.constant 0 : index
    %c0_8 = arith.constant 0 : index
    %7 = vector.load %arg6[%c0_6, %c0_7, %c0_8] : memref<1x32x128xf32, #tpu.memory_space<vmem>>, vector<1x32x128xf32>
    %8 = vector.shape_cast %7 : vector<1x32x128xf32> to vector<32x128xf32>
    %9 = vector.shape_cast %6 : vector<32x128xf32> to vector<1x32x128xf32>
    tpu.vector_store %arg6[%c0_6, %c0_7, %c0_8], %9 {strides = array<i32>} : memref<1x32x128xf32, #tpu.memory_space<vmem>>, vector<1x32x128xf32>,
    return
  }
  func.func @transform_0(%arg0: i32, %arg1: i32, %arg2: i32) -> (i32, i32) {
    %c0_i32 = arith.constant 0 : i32
    %c0_i32_0 = arith.constant 0 : i32
    return %arg0, %c0_i32 : i32, i32
  }
  func.func @transform_1(%arg0: i32, %arg1: i32, %arg2: i32) -> (i32, i32, i32) {
    %c0_i32 = arith.constant 0 : i32
    %c0_i32_0 = arith.constant 0 : i32
    return %arg1, %c0_i32, %arg2 : i32, i32, i32
  }
  func.func @transform_2(%arg0: i32, %arg1: i32, %arg2: i32) -> (i32, i32) {
    %c0_i32 = arith.constant 0 : i32
    %c0_i32_0 = arith.constant 0 : i32
    return %arg0, %c0_i32 : i32, i32
  }
  func.func @transform_3(%arg0: i32, %arg1: i32, %arg2: i32) -> (i32, i32, i32) {
    %c0_i32 = arith.constant 0 : i32
    return %arg1, %arg0, %arg2 : i32, i32, i32
  }
}

</mosaic_0001>

<llo_original>
// kernel: tpu_custom_call.1
$region0: #{tpu_custom_call.1}
  #allocation0 [shape = 'u32[]', space=smem, size = 0x4, offset = 0x4, fixed_abs, tag = 'smem constant byte address 0x4 - core index']
  #allocation1 [shape = 'u32[72,128]{1,0:T(1,128)}', space=vmem, size = 0x9000, scoped, tag = 'internal scratch']
  %s0 = inlined_call_operand.vmem [shape: f32[32,16], index: 0, kind: input, shape index: {}]
  %s1 = inlined_call_operand.vmem [shape: f32[2,16,128], index: 1, kind: input, shape index: {}]
  %s2 = inlined_call_operand.vmem [shape: f32[32,1], index: 2, kind: input, shape index: {}]
  %s3 = inlined_call_operand.hbm [shape: f32[2,32,128], index: 3, kind: output, shape index: {}]
  %s4 = sld [smem:[#allocation0]]
  $region45: #{tpu_custom_call.1} parent=0
    _
  %s6 = ssub.s32 1, %s4
  %s7 = scalar_select 0, %s6, %s4
  $region1: #{tpu_custom_call.1} parent=0
    #allocation2 [shape = 'u8[32768]{0}', space=vmem, size = 0x8000, scoped, tag = 'output window, operand 0']
    #allocation3 [shape = 's32[2]{0}', space=sflag, size = 0x8, scoped, tag = 'scoped memory for tpu_custom_call.1']
    %8 = vsyncpa [#allocation3], 0
    %s9 = scalar_lea.sflag [#allocation3], 1
    %10 = vsyncpa %s9, 0
    loop: start=0, step=1, limit=4
    $region2: #{tpu_custom_call.1} parent=1 // loop_pre_header
      _
    $region3: #{tpu_custom_call.1} parent=1 // loop_header
      %s12 = sphi 0, %s16
      %p13 = scmp.ge.s32.totalorder %s12, 4
      %s19 = sphi 0, %s38
      %s20 = sphi 0, %s34
      %s21 = sphi 0, %s30
      %s22 = sphi 0, %s19
      %s23 = sphi 0, %s20
      %s24 = sphi 0, %s21
      %s25 = sphi 0, %s22
      %s26 = sphi 0, %s23
      %s27 = sphi 0, %s24
      %s41 = sphi 0, %s43
      %s44 = sphi 0, %s41
      %s45 = sphi 0, %s44
      %s61 = sphi 0, %s45
      %s69 = sphi 0, %s71
      %s72 = sphi 0, %s69
      %s73 = sphi 0, %s72
      %s89 = sphi 0, %s73
      %s95 = sphi 0, %s97
      %s98 = sphi 0, %s95
      %s99 = sphi 0, %s98
      %s115 = sphi 0, %s99
      %s125 = sphi 0, %s127
      %s128 = sphi 0, %s125
      %s129 = sphi 0, %s128
      %s145 = sphi 0, %s129
    $region4: #{tpu_custom_call.1} parent=1 // loop_header_branch
      %15 = sbr.rel (%p13) target = $region8
    $region5: #{tpu_custom_call.1} parent=1 // loop_body
      %s17 = ssub.s32 %s12, 1
      %s18 = ssub.s32 %s12, 2
      %s28 = sadd.s32 1, %s21
      %p29 = scmp.ge.s32.totalorder %s28, 1
      %s30 = scalar_select %p29, 0, %s28
      %s31 = sadd.s32 1, %s20
      %s32 = scalar_select %p29, %s31, %s20
      %p33 = scmp.ge.s32.totalorder %s32, 2
      %s34 = scalar_select %p33, 0, %s32
      %s35 = sadd.s32 1, %s19
      %s36 = scalar_select %p33, %s35, %s19
      %p37 = scmp.ge.s32.totalorder %s36, 1
      %s38 = scalar_select %p37, 0, %s36
      %s39 = ssub.s32 %s19, %s38
      %p40 = scmp.eq.s32.totalorder %s39, 0
      %s42 = sadd.s32 %s41, 1
      %s43 = scalar_select %p40, %s41, %s42
      %p46 = pneg %p40
      %p47 = scmp.eq.s32.totalorder %s12, 1
      %p48 = por %p46, %p47
      %p49 = scmp.ne.s32.totalorder %s41, %s44
      %p50 = scmp.eq.s32.totalorder %s12, 0
      %p51 = por %p49, %p50
      %p52 = scmp.ne.s32.totalorder %s41, %s44
      %p53 = scmp.eq.s32.totalorder %s17, 1
      %p54 = por %p52, %p53
      %p55 = scmp.ne.s32.totalorder %s44, %s45
      %p56 = scmp.eq.s32.totalorder %s17, 0
      %p57 = por %p55, %p56
      %p58 = scmp.ne.s32.totalorder %s44, %s45
      %p59 = scmp.eq.s32.totalorder %s18, 1
      %p60 = por %p58, %p59
      %p62 = scmp.ne.s32.totalorder %s45, %s61
      %p63 = scmp.eq.s32.totalorder %s18, 0
      %p64 = por %p62, %p63
      %s65 = ssub.s32 %s20, %s34
      %s66 = ssub.s32 %s21, %s30
      %s67 = sor.u32 %s65, %s66
      %p68 = scmp.eq.s32.totalorder %s67, 0
      %s70 = sadd.s32 %s69, 1
      %s71 = scalar_select %p68, %s69, %s70
      %p74 = pneg %p68
      %p75 = scmp.eq.s32.totalorder %s12, 1
      %p76 = por %p74, %p75
      %p77 = scmp.ne.s32.totalorder %s69, %s72
      %p78 = scmp.eq.s32.totalorder %s12, 0
      %p79 = por %p77, %p78
      %p80 = scmp.ne.s32.totalorder %s69, %s72
      %p81 = scmp.eq.s32.totalorder %s17, 1
      %p82 = por %p80, %p81
      %p83 = scmp.ne.s32.totalorder %s72, %s73
      %p84 = scmp.eq.s32.totalorder %s17, 0
      %p85 = por %p83, %p84
      %p86 = scmp.ne.s32.totalorder %s72, %s73
      %p87 = scmp.eq.s32.totalorder %s18, 1
      %p88 = por %p86, %p87
      %p90 = scmp.ne.s32.totalorder %s73, %s89
      %p91 = scmp.eq.s32.totalorder %s18, 0
      %p92 = por %p90, %p91
      %s93 = ssub.s32 %s19, %s38
      %p94 = scmp.eq.s32.totalorder %s93, 0
      %s96 = sadd.s32 %s95, 1
      %s97 = scalar_select %p94, %s95, %s96
      %p100 = pneg %p94
      %p101 = scmp.eq.s32.totalorder %s12, 1
      %p102 = por %p100, %p101
      %p103 = scmp.ne.s32.totalorder %s95, %s98
      %p104 = scmp.eq.s32.totalorder %s12, 0
      %p105 = por %p103, %p104
      %p106 = scmp.ne.s32.totalorder %s95, %s98
      %p107 = scmp.eq.s32.totalorder %s17, 1
      %p108 = por %p106, %p107
      %p109 = scmp.ne.s32.totalorder %s98, %s99
      %p110 = scmp.eq.s32.totalorder %s17, 0
      %p111 = por %p109, %p110
      %p112 = scmp.ne.s32.totalorder %s98, %s99
      %p113 = scmp.eq.s32.totalorder %s18, 1
      %p114 = por %p112, %p113
      %p116 = scmp.ne.s32.totalorder %s99, %s115
      %p117 = scmp.eq.s32.totalorder %s18, 0
      %p118 = por %p116, %p117
      %s119 = ssub.s32 %s20, %s34
      %s120 = ssub.s32 %s19, %s38
      %s121 = sor.u32 %s119, %s120
      %s122 = ssub.s32 %s21, %s30
      %s123 = sor.u32 %s121, %s122
      %p124 = scmp.eq.s32.totalorder %s123, 0
      %s126 = sadd.s32 %s125, 1
      %s127 = scalar_select %p124, %s125, %s126
      %p130 = pneg %p124
      %p131 = scmp.eq.s32.totalorder %s12, 1
      %p132 = por %p130, %p131
      %p133 = scmp.ne.s32.totalorder %s125, %s128
      %p134 = scmp.eq.s32.totalorder %s12, 0
      %p135 = por %p133, %p134
      %p136 = scmp.ne.s32.totalorder %s125, %s128
      %p137 = scmp.eq.s32.totalorder %s17, 1
      %p138 = por %p136, %p137
      %p139 = scmp.ne.s32.totalorder %s128, %s129
      %p140 = scmp.eq.s32.totalorder %s17, 0
      %p141 = por %p139, %p140
      %p142 = scmp.ne.s32.totalorder %s128, %s129
      %p143 = scmp.eq.s32.totalorder %s18, 1
      %p144 = por %p142, %p143
      %p146 = scmp.ne.s32.totalorder %s129, %s145
      %p147 = scmp.eq.s32.totalorder %s18, 0
      %p148 = por %p146, %p147
      %p149 = scmp.le.s32.totalorder 1, %s12
      %p150 = scmp.lt.s32.totalorder %s12, 3
      %p151 = pnand %p149, %p150
      %p152 = pneg %p151
      // Predicated region
      $region9: #{tpu_custom_call.1} parent=5 // pred_check
        _
      $region10: #{tpu_custom_call.1} parent=5 // pred_check_branch
        %154 = sbr.rel (%p151) target = $region12
      $region11: #{tpu_custom_call.1} parent=5 // pred_region
        %s155 = ssub.s32 %s12, 1
        // Predicated region
        $region13: #{tpu_custom_call.1} parent=11 // pred_check
          %p156 = pneg %p57
        $region14: #{tpu_custom_call.1} parent=11 // pred_check_branch
          %158 = sbr.rel (%p156) target = $region16
        $region15: #{tpu_custom_call.1} parent=11 // pred_region
          %s159 = smul.u32 4, %s22
          %p160 = scmp.lt.s32.totalorder %s159, 3
          %s161 = scalar_select %p160, %s159, 3
          %s162 = smul.addr %s161, 8
          %s163 = scalar_lea.vmem %s0, %s162
          %s164 = smul.u32 4, %s22
        $region16: #{tpu_custom_call.1} parent=11 // pred_fallthru
          _
        // Predicated region
        $region17: #{tpu_custom_call.1} parent=11 // pred_check
          %p165 = pneg %p111
        $region18: #{tpu_custom_call.1} parent=11 // pred_check_branch
          %167 = sbr.rel (%p165) target = $region20
        $region19: #{tpu_custom_call.1} parent=11 // pred_region
          %s168 = smul.u32 4, %s22
          %p169 = scmp.lt.s32.totalorder %s168, 3
          %s170 = scalar_select %p169, %s168, 3
          %s171 = smul.addr %s170, 8
          %s172 = scalar_lea.vmem %s2, %s171
          %s173 = smul.u32 4, %s22
        $region20: #{tpu_custom_call.1} parent=11 // pred_fallthru
          _
      $region12: #{tpu_custom_call.1} parent=5 // pred_fallthru
        _
      %p174 = scmp.lt.s32.totalorder %s12, 2
      // Predicated region
      $region21: #{tpu_custom_call.1} parent=5 // pred_check
        %p175 = pneg %p174
      $region22: #{tpu_custom_call.1} parent=5 // pred_check_branch
        %177 = sbr.rel (%p175) target = $region24
      $region23: #{tpu_custom_call.1} parent=5 // pred_region
        // Predicated region
        $region25: #{tpu_custom_call.1} parent=23 // pred_check
          %p178 = pneg %p79
        $region26: #{tpu_custom_call.1} parent=23 // pred_check_branch
          %180 = sbr.rel (%p178) target = $region28
        $region27: #{tpu_custom_call.1} parent=23 // pred_region
          %p181 = scmp.lt.s32.totalorder %s20, 1
          %s182 = scalar_select %p181, %s20, 1
          %p183 = scmp.lt.s32.totalorder %s21, 0
          %s184 = scalar_select %p183, %s21, 0
          %s185 = smul.addr %s182, 2
          %s186 = sadd.s32 %s184, %s185
          %s187 = smul.addr %s186, 8
          %s188 = scalar_lea.vmem %s1, %s187
        $region28: #{tpu_custom_call.1} parent=23 // pred_fallthru
          _
      $region24: #{tpu_custom_call.1} parent=5 // pred_fallthru
        _
      %p189 = scmp.le.s32.totalorder 1, %s12
      %p190 = scmp.lt.s32.totalorder %s12, 3
      %p191 = pnand %p189, %p190
      %p192 = pneg %p191
      // Predicated region
      $region29: #{tpu_custom_call.1} parent=5 // pred_check
        _
      $region30: #{tpu_custom_call.1} parent=5 // pred_check_branch
        %194 = sbr.rel (%p191) target = $region32
      $region31: #{tpu_custom_call.1} parent=5 // pred_region
        %s195 = ssub.s32 %s12, 1
        %s196 = smul.u32 4, %s22
        %p197 = scmp.lt.s32.totalorder %s196, 3
        %s198 = scalar_select %p197, %s196, 3
        %s199 = smul.addr %s198, 8
        %s200 = scalar_lea.vmem %s0, %s199
        %p201 = pneg %p57
        %p202 = pneg %p54
        %p203 = scmp.lt.s32.totalorder %s23, 1
        %s204 = scalar_select %p203, %s23, 1
        %p205 = scmp.lt.s32.totalorder %s24, 0
        %s206 = scalar_select %p205, %s24, 0
        %s207 = smul.addr %s204, 2
        %s208 = sadd.s32 %s206, %s207
        %s209 = smul.addr %s208, 8
        %s210 = scalar_lea.vmem %s1, %s209
        %p211 = pneg %p85
        %p212 = pneg %p82
        %s213 = smul.u32 4, %s22
        %p214 = scmp.lt.s32.totalorder %s213, 3
        %s215 = scalar_select %p214, %s213, 3
        %s216 = smul.addr %s215, 8
        %s217 = scalar_lea.vmem %s2, %s216
        %p218 = pneg %p111
        %p219 = pneg %p108
        %p220 = pneg %p141
        %p221 = pneg %p138
        %s222 = sand.u32 %s128, 1
        %s223 = scalar_lea.sflag [#allocation3], %s222
        %s224 = sand.u32 %s128, 1
        %s225 = smul.addr %s224, 32
        %s226 = scalar_lea.vmem [#allocation2], %s225
        %s227 = smul.u32 4, %s22
        %p228 = scmp.lt.s32.totalorder %s227, 3
        %s229 = scalar_select %p228, %s227, 3
        %s230 = smul.addr %s229, 8
        %s231 = scalar_lea.vmem %s0, %s230
        %s232 = smul.u32 4, %s22
        %p233 = scmp.lt.s32.totalorder %s23, 1
        %s234 = scalar_select %p233, %s23, 1
        %p235 = scmp.lt.s32.totalorder %s24, 0
        %s236 = scalar_select %p235, %s24, 0
        %s237 = smul.addr %s234, 2
        %s238 = sadd.s32 %s236, %s237
        %s239 = smul.addr %s238, 8
        %s240 = scalar_lea.vmem %s1, %s239
        %s241 = smul.u32 4, %s22
        %p242 = scmp.lt.s32.totalorder %s241, 3
        %s243 = scalar_select %p242, %s241, 3
        %s244 = smul.addr %s243, 8
        %s245 = scalar_lea.vmem %s2, %s244
        %s246 = smul.u32 4, %s22
        %s247 = smul.u32 4, %s22
        %v248 = vld [vmem:[%s231] sm:$0xff]
        %v249 = vld [vmem:[%s231 + $0x8] sm:$0xff]
        %v250 = vld [vmem:[%s231 + $0x10] sm:$0xff]
        %v251 = vld [vmem:[%s231 + $0x18] sm:$0xff]
        %v252 = vld [vmem:[%s240] sm:$0xff]
        %v253 = vld [vmem:[%s240 + $0x8] sm:$0xff]
        %v254 = vld [vmem:[%s245] sm:$0xff]
        %v255 = vld [vmem:[%s245 + $0x8] sm:$0xff]
        %v256 = vld [vmem:[%s245 + $0x10] sm:$0xff]
        %v257 = vld [vmem:[%s245 + $0x18] sm:$0xff]
        %259 = vset.pattern.permute.xlu0 0
        %260 = vperm.xlu0 %259, %v254
        %v261 = vpop.permute.xlu0 %260
        %264 = vset.pattern.permute.xlu0 0
        %265 = vperm.xlu0 %264, %v255
        %v266 = vpop.permute.xlu0 %265
        %269 = vset.pattern.permute.xlu0 0
        %270 = vperm.xlu0 %269, %v256
        %v271 = vpop.permute.xlu0 %270
        %274 = vset.pattern.permute.xlu0 0
        %275 = vperm.xlu0 %274, %v257
        %v276 = vpop.permute.xlu0 %275
        %vm278 = vcmask 130048
        %v280 = vsel %vm278, %v248, 0
        %v283 = vsel %vm278, %v249, 0
        %v286 = vsel %vm278, %v250, 0
        %v289 = vsel %vm278, %v251, 0
        %291 = vmatpush.msra.mxu0 0.0
        %292 = vmatpush.msra.mxu0 0.0
        %293 = vmatpush.msra.mxu0 0.0
        %294 = vmatpush.msra.mxu0 0.0
        %295 = vmatpush.msra.mxu0 0.0
        %296 = vmatpush.msra.mxu0 0.0
        %297 = vmatpush.msra.mxu0 0.0
        %298 = vmatpush.msra.mxu0 0.0
        %299 = vmatpush.msra.mxu0 0.0
        %300 = vmatpush.msra.mxu0 0.0
        %301 = vmatpush.msra.mxu0 0.0
        %302 = vmatpush.msra.mxu0 0.0
        %303 = vmatpush.msra.mxu0 0.0
        %304 = vmatpush.msra.mxu0 0.0
        %305 = vmatpush.msra.mxu0 %v253
        %306 = vmatpush.msra.mxu0 %v252
        %307 = vmatmul.f32.gmra.mxu0 %v280
        %v308 = vpop.f32.mrf.mxu0
        %v309 = vadd.f32 %v261, %v308
        %310 = vmatmul.f32.gmra.mxu0 %v283
        %v311 = vpop.f32.mrf.mxu0
        %v312 = vadd.f32 %v266, %v311
        %313 = vmatmul.f32.gmra.mxu0 %v286
        %v314 = vpop.f32.mrf.mxu0
        %v315 = vadd.f32 %v271, %v314
        %316 = vmatmul.f32.gmra.mxu0 %v289
        %v317 = vpop.f32.mrf.mxu0
        %v318 = vadd.f32 %v276, %v317
        %319 = vdwg.mxu0
        %320 = vst [vmem:[%s226] sm:$0xff] %v309
        %321 = vst [vmem:[%s226 + $0x8] sm:$0xff] %v312
        %322 = vst [vmem:[%s226 + $0x10] sm:$0xff] %v315
        %323 = vst [vmem:[%s226 + $0x18] sm:$0xff] %v318
        %s324 = sand.u32 %s128, 1
        %s325 = scalar_lea.sflag [#allocation3], %s324
        %s326 = sand.u32 %s128, 1
        %s327 = smul.addr %s326, 32
        %s328 = scalar_lea.vmem [#allocation2], %s327
        // Predicated region
        $region33: #{tpu_custom_call.1} parent=31 // pred_check
          %p329 = pneg %p138
        $region34: #{tpu_custom_call.1} parent=31 // pred_check_branch
          %331 = sbr.rel (%p329) target = $region36
        $region35: #{tpu_custom_call.1} parent=31 // pred_region
          %s332 = smul.u32 4, %s22
          %334 = vsyncadd %s325, 0
          %s335 = sadd.s32 %s24, %s332
          %s336 = smul.addr %s23, 4
          %s337 = sadd.s32 %s335, %s336
          %s338 = smul.addr %s337, 8
          %s339 = scalar_lea.hbm %s3, %s338
          %s340 = sshll.u32 %s328, 4
          %s341 = int_to_ptr.vmem [resolvable:$true] %s340
          %s342 = sshll.u32 %s339, 4
          %s343 = int_to_ptr.hbm [resolvable:$true] %s342
          %348 = dma.vmem_to_hbm [thread:$0]  %s341, 512, %s343, %s325, 128, 128, 8
        $region36: #{tpu_custom_call.1} parent=31 // pred_fallthru
          _
      $region32: #{tpu_custom_call.1} parent=5 // pred_fallthru
        _
      %p349 = scmp.le.s32.totalorder 2, %s12
      // Predicated region
      $region37: #{tpu_custom_call.1} parent=5 // pred_check
        %p350 = pneg %p349
      $region38: #{tpu_custom_call.1} parent=5 // pred_check_branch
        %352 = sbr.rel (%p350) target = $region40
      $region39: #{tpu_custom_call.1} parent=5 // pred_region
        %s353 = ssub.s32 %s12, 2
        // Predicated region
        $region41: #{tpu_custom_call.1} parent=39 // pred_check
          %p354 = pneg %p144
        $region42: #{tpu_custom_call.1} parent=39 // pred_check_branch
          %356 = sbr.rel (%p354) target = $region44
        $region43: #{tpu_custom_call.1} parent=39 // pred_region
          %s357 = sand.u32 %s129, 1
          %s358 = scalar_lea.sflag [#allocation3], %s357
          %s359 = sand.u32 %s129, 1
          %s360 = smul.addr %s359, 32
          %s361 = scalar_lea.vmem [#allocation2], %s360
          %363 = dma.done %s358, 512
        $region44: #{tpu_custom_call.1} parent=39 // pred_fallthru
          _
      $region40: #{tpu_custom_call.1} parent=5 // pred_fallthru
        _
    $region6: #{tpu_custom_call.1} parent=1 // loop_footer
      %s16 = sadd.s32 1, %s12
    $region7: #{tpu_custom_call.1} parent=1 // loop_footer_branch
      %11 = sbr.rel target = $region3
    $region8: #{tpu_custom_call.1} parent=1 // loop_exit
      _
    %364 = vsyncpa [#allocation3], 1
    %s365 = scalar_lea.sflag [#allocation3], 1
    %366 = vsyncpa %s365, 1

</llo_original>
